<compile_context>
chip_gen: v6e
topology: v6e:2x2x1
jax: 0.10.0
libtpu: 0.0.40
codegen_flags: <defaults>
</compile_context>

<pallas_src>
import jax
import jax.numpy as jnp
from jax.experimental import pallas as pl
from jax.experimental.pallas import tpu as pltpu

_LANE = 128
_TARGET_BLOCK_BYTES = 4 << 20          # ~4 MiB per block per array
_VMEM_LIMIT_BYTES = 32 * 1024 * 1024   # explicit scoped-VMEM limit (safe on all gens)
_LANE_MULTIPLE_WIDTHS = (4096, 2048, 1024, 512, 384, 256, 128)


def _packed_sublane(dtype):
    """Sublane multiple for packed dtypes: 8 (f32), 16 (bf16), 32 (int8/fp8)."""
    itemsize = jnp.dtype(dtype).itemsize
    return max(8, 8 * (4 // max(1, itemsize)))


def _choose_cols(total, sub):
    """Widest lane-dense column count that divides `total` (no copy needed)."""
    # Prefer multiples of 128 with at least one full sublane group of rows.
    for c in _LANE_MULTIPLE_WIDTHS:
        if total % c == 0 and total // c >= sub:
            return c
    for c in _LANE_MULTIPLE_WIDTHS:
        if total % c == 0:
            return c
    # No 128-multiple divisor: largest divisor in [64, 1024] (masked lanes,
    # but still zero-copy).
    hi = min(total, 1024)
    for c in range(hi, 63, -1):
        if total % c == 0:
            return c
    return None


def _block_rows_for(rows, cols, itemsize, sub):
    """~4 MiB blocks, sublane-multiple rows, and >= 2 grid steps when possible."""
    if rows <= sub:
        return rows
    max_br = max(sub, _TARGET_BLOCK_BYTES // (cols * itemsize))
    br = min(rows, max_br)
    br = max(sub, (br // sub) * sub)
    # Guarantee >= 2 grid steps so the "parallel" axis can span both v7x TCs.
    if pl.cdiv(rows, br) < 2:
        half = -(-rows // 2)              # ceil(rows / 2)
        half = -(-half // sub) * sub      # round up to sublane multiple
        br = max(sub, min(br, half))
    return br


def _make_const_kernel(mean, inv):
    """Kernel with mean / 1/(std+eps) baked in as immediates (no SMEM loads)."""
    mean = float(mean)
    inv = float(inv)

    def kernel(x_ref, o_ref):
        x = x_ref[...].astype(jnp.float32)
        o_ref[...] = ((x - mean) * inv).astype(o_ref.dtype)

    return kernel


def _smem_kernel(scalars_ref, x_ref, o_ref):
    """Kernel for traced statistics: [mean, 1/(std+eps)] live in f32 SMEM."""
    mean = scalars_ref[0]
    inv = scalars_ref[1]
    x = x_ref[...].astype(jnp.float32)
    o_ref[...] = ((x - mean) * inv).astype(o_ref.dtype)


def standard_normalize(x, mean, std, eps=1e-8):
    """Pallas equivalent of StandardNormalizer.forward: (x - mean) / (std + eps)."""
    if not jnp.issubdtype(x.dtype, jnp.floating):
        raise TypeError("standard_normalize expects a floating-point input")

    orig_shape = x.shape
    orig_dtype = x.dtype
    n = x.size
    if n == 0:
        return x

    itemsize = jnp.dtype(orig_dtype).itemsize
    sub = _packed_sublane(orig_dtype)

    flat = x.reshape(-1)                  # free: contiguous row-major view
    cols = _choose_cols(n, sub)
    pad = 0
    total = n
    if cols is None:
        # TODO(synk): last-resort padded copy for element counts with no usable
        # divisor (e.g. large primes); all other shapes take the zero-copy path.
        pad = (-n) % _LANE
        flat = jnp.concatenate([flat, jnp.zeros((pad,), flat.dtype)])
        total = n + pad
        cols = _choose_cols(total, sub)

    rows = total // cols
    x2 = flat.reshape(rows, cols)         # free

    block_rows = _block_rows_for(rows, cols, itemsize, sub)
    grid = (pl.cdiv(rows, block_rows),)
    block = (block_rows, cols)

    compiler_params = pltpu.CompilerParams(
        dimension_semantics=("parallel",),   # shards grid steps across TCs on v7x
        vmem_limit_bytes=_VMEM_LIMIT_BYTES,
    )
    out_shape = jax.ShapeDtypeStruct((rows, cols), orig_dtype)
    # Note: input_output_aliases={...: 0} could halve peak HBM footprint when
    # callers can donate x; not used here since the caller reuses x.

    if isinstance(mean, (int, float)) and isinstance(std, (int, float)):
        # Python-float statistics (the StandardNormalizer path): bake them in.
        inv = 1.0 / (float(std) + float(eps))
        out2 = pl.pallas_call(
            _make_const_kernel(float(mean), inv),
            out_shape=out_shape,
            grid_spec=pltpu.PrefetchScalarGridSpec(
                num_scalar_prefetch=0,
                grid=grid,
                in_specs=[pl.BlockSpec(block, lambda i: (i, 0))],
                out_specs=pl.BlockSpec(block, lambda i: (i, 0)),
            ),
            compiler_params=compiler_params,
        )(x2)
    else:
        # Traced statistics: keep them in float32 SMEM via scalar prefetch.
        mean32 = jnp.asarray(mean, jnp.float32).reshape(())
        inv32 = (1.0 / (jnp.asarray(std, jnp.float32).reshape(()) + eps))
        scalars = jnp.stack([mean32, inv32]).astype(jnp.float32)
        out2 = pl.pallas_call(
            _smem_kernel,
            out_shape=out_shape,
            grid_spec=pltpu.PrefetchScalarGridSpec(
                num_scalar_prefetch=1,
                grid=grid,
                in_specs=[pl.BlockSpec(block, lambda i, s: (i, 0))],
                out_specs=pl.BlockSpec(block, lambda i, s: (i, 0)),
            ),
            compiler_params=compiler_params,
        )(scalars, x2)

    out_flat = out2.reshape(-1)
    if pad:
        out_flat = out_flat[:n]
    return out_flat.reshape(orig_shape)


class StandardNormalizer:
    """JAX/Pallas port of the PyTorch StandardNormalizer."""

    def __init__(self, mean=None, std=None, eps=1e-8):
        self.mean = mean
        self.std = std
        self.eps = eps
        self.fitted = mean is not None and std is not None

    def fit(self, x):
        # Matches torch.Tensor.std() (unbiased / ddof=1); stats kept as floats.
        self.mean = float(jnp.mean(x))
        self.std = float(jnp.std(x, ddof=1))
        self.fitted = True
        return self

    def forward(self, x):
        if not self.fitted:
            raise RuntimeError("Normalizer not fitted. Call fit() first.")
        return standard_normalize(x, self.mean, self.std, self.eps)

    def inverse(self, x):
        if not self.fitted:
            raise RuntimeError("Normalizer not fitted. Call fit() first.")
        # TODO(synk): inverse stays in plain JAX (same trivial elementwise form).
        return x * (self.std + self.eps) + self.mean


if __name__ == "__main__":
    key = jax.random.PRNGKey(0)

    # Lane-aligned f32 input (zero-copy, lane-dense path).
    x = jax.random.normal(key, (2, 4, 16, 16), dtype=jnp.float32) * 3.0 + 1.5
    norm = StandardNormalizer().fit(x)
    y = jax.block_until_ready(norm.forward(x))
    ref = (x - norm.mean) / (norm.std + norm.eps)
    assert y.shape == x.shape and y.dtype == x.dtype
    assert float(jnp.max(jnp.abs(y - ref))) < 1e-5

    # Ragged (non-128-multiple) size: zero-copy masked-lane path (no pad copy).
    x2 = jax.random.normal(jax.random.PRNGKey(1), (3, 5, 7), dtype=jnp.float32)
    norm2 = StandardNormalizer().fit(x2)
    y2 = jax.block_until_ready(norm2.forward(x2))
    ref2 = (x2 - norm2.mean) / (norm2.std + norm2.eps)
    assert y2.shape == x2.shape
    assert float(jnp.max(jnp.abs(y2 - ref2))) < 1e-5

    # bf16 input: packed-sublane (16-row) blocking, grid split into >= 2 steps.
    x3 = (jax.random.normal(jax.random.PRNGKey(2), (4, 256, 128), dtype=jnp.float32)
          * 2.0 + 0.5).astype(jnp.bfloat16)
    norm3 = StandardNormalizer().fit(x3.astype(jnp.float32))
    y3 = jax.block_until_ready(norm3.forward(x3))
    ref3 = (x3.astype(jnp.float32) - norm3.mean) / (norm3.std + norm3.eps)
    assert y3.shape == x3.shape and y3.dtype == jnp.bfloat16
    assert float(jnp.max(jnp.abs(y3.astype(jnp.float32) - ref3))) < 5e-2

    # Traced-statistics path (f32 SMEM scalar prefetch).
    y4 = jax.block_until_ready(
        standard_normalize(x, jnp.float32(norm.mean), jnp.float32(norm.std)))
    assert float(jnp.max(jnp.abs(y4 - ref))) < 1e-5

    print("KERNEL_OK")
</pallas_src>

<mosaic_0001>
module attributes {stable_mosaic.version = 11 : i64} {
  func.func @kernel(%arg0: i32, %arg1: memref<8x256xf32, #tpu.memory_space<vmem>>, %arg2: memref<8x256xf32, #tpu.memory_space<vmem>>) attributes {dimension_semantics = [#tpu.dimension_semantics<parallel>], iteration_bounds = array<i64: 1>, scalar_prefetch = 0 : i64, scratch_operands = 0 : i64, tpu.core_type = #tpu.core_type<tc>, window_params = [{transform_indices = @transform_0, window_bounds = array<i64: 8, 256>}, {transform_indices = @transform_1, window_bounds = array<i64: 8, 256>}]} {
    %c0 = arith.constant 0 : index
    %c0_0 = arith.constant 0 : index
    %0 = vector.load %arg1[%c0, %c0_0] : memref<8x256xf32, #tpu.memory_space<vmem>>, vector<8x256xf32>
    %cst = arith.constant 1.44425416 : f32
    %1 = vector.broadcast %cst : f32 to vector<8x256xf32>
    %2 = arith.subf %0, %1 : vector<8x256xf32>
    %cst_1 = arith.constant 0.330281883 : f32
    %3 = vector.broadcast %cst_1 : f32 to vector<8x256xf32>
    %4 = arith.mulf %2, %3 : vector<8x256xf32>
    %c0_2 = arith.constant 0 : index
    %c0_3 = arith.constant 0 : index
    %5 = vector.load %arg2[%c0_2, %c0_3] : memref<8x256xf32, #tpu.memory_space<vmem>>, vector<8x256xf32>
    tpu.vector_store %arg2[%c0_2, %c0_3], %4 {strides = array<i32>} : memref<8x256xf32, #tpu.memory_space<vmem>>, vector<8x256xf32>,
    return
  }
  func.func @transform_0(%arg0: i32) -> (i32, i32) {
    %c0_i32 = arith.constant 0 : i32
    %c0_i32_0 = arith.constant 0 : i32
    return %arg0, %c0_i32 : i32, i32
  }
  func.func @transform_1(%arg0: i32) -> (i32, i32) {
    %c0_i32 = arith.constant 0 : i32
    %c0_i32_0 = arith.constant 0 : i32
    return %arg0, %c0_i32 : i32, i32
  }
}

</mosaic_0001>

<llo_original>
// kernel: tpu_custom_call.1
$region0: #{tpu_custom_call.1}
  #allocation0 [shape = 'u32[]', space=smem, size = 0x4, offset = 0x4, fixed_abs, tag = 'smem constant byte address 0x4 - core index']
  #allocation1 [shape = 'u32[144,128]{1,0:T(1,128)}', space=vmem, size = 0x12000, scoped, tag = 'internal scratch']
  %s0 = inlined_call_operand.hbm [shape: f32[8,256], index: 0, kind: input, shape index: {}]
  %s1 = inlined_call_operand.hbm [shape: f32[8,256], index: 1, kind: output, shape index: {}]
  %s2 = sld [smem:[#allocation0]]
  $region18: #{tpu_custom_call.1} parent=0
    _
  %s4 = ssub.s32 1, %s2
  %s5 = scalar_select 0, %s4, %s2
  $region1: #{tpu_custom_call.1} parent=0
    #allocation2 [shape = 'u8[8192]{0}', space=vmem, size = 0x2000, scoped, tag = 'input window, operand 0, single buffered']
    #allocation3 [shape = 's32[1]{0}', space=sflag, size = 0x4, scoped, tag = 'scoped memory for tpu_custom_call.1']
    #allocation4 [shape = 's32[1]{0}', space=sflag, size = 0x4, scoped, tag = 'scoped memory for tpu_custom_call.1']
    #allocation5 [shape = 'u8[8192]{0}', space=vmem, size = 0x2000, scoped, tag = 'output window, operand 0, single buffered']
    %6 = vsyncpa [#allocation3], 0
    %7 = vsyncpa [#allocation4], 0
    // Predicated region
    $region2: #{tpu_custom_call.1} parent=1 // pred_check
      _
    $region3: #{tpu_custom_call.1} parent=1 // pred_check_branch
      %9 = sbr.rel (0) target = $region5
    $region4: #{tpu_custom_call.1} parent=1 // pred_region
      %s11 = ssub.s32 256, 256
      %12 = vsyncadd [#allocation3], %s11
      %s14 = sshll.u32 [#allocation2], 4
      %s15 = int_to_ptr.vmem [resolvable:$true] %s14
      %17 = dma.hbm_to_vmem [thread:$0]  %s0, 256, %s15, [#allocation3]
    $region5: #{tpu_custom_call.1} parent=1 // pred_fallthru
      _
    // Predicated region
    $region6: #{tpu_custom_call.1} parent=1 // pred_check
      _
    $region7: #{tpu_custom_call.1} parent=1 // pred_check_branch
      %19 = sbr.rel (0) target = $region9
    $region8: #{tpu_custom_call.1} parent=1 // pred_region
      %20 = dma.done [#allocation3], 256
    $region9: #{tpu_custom_call.1} parent=1 // pred_fallthru
      _
    %v21 = vld [vmem:[#allocation2] sm:$0xff]
    %v22 = vld [vmem:[#allocation2 + $0x8] sm:$0xff]
    %v23 = vsub.f32 %v21, 1.4442542
    %v24 = vsub.f32 %v22, 1.4442542
    %v25 = vmul.f32 %v23, 0.33028188
    %v26 = vmul.f32 %v24, 0.33028188
    %27 = vst [vmem:[#allocation5] sm:$0xff] %v25
    %28 = vst [vmem:[#allocation5 + $0x8] sm:$0xff] %v26
    // Predicated region
    $region10: #{tpu_custom_call.1} parent=1 // pred_check
      _
    $region11: #{tpu_custom_call.1} parent=1 // pred_check_branch
      %30 = sbr.rel (0) target = $region13
    $region12: #{tpu_custom_call.1} parent=1 // pred_region
      %s32 = ssub.s32 256, 256
      %33 = vsyncadd [#allocation4], %s32
      %s35 = sshll.u32 [#allocation5], 4
      %s36 = int_to_ptr.vmem [resolvable:$true] %s35
      %38 = dma.vmem_to_hbm [thread:$0]  %s36, 256, %s1, [#allocation4]
    $region13: #{tpu_custom_call.1} parent=1 // pred_fallthru
      _
    // Predicated region
    $region14: #{tpu_custom_call.1} parent=1 // pred_check
      _
    $region15: #{tpu_custom_call.1} parent=1 // pred_check_branch
      %40 = sbr.rel (0) target = $region17
    $region16: #{tpu_custom_call.1} parent=1 // pred_region
      %41 = dma.done [#allocation4], 256
    $region17: #{tpu_custom_call.1} parent=1 // pred_fallthru
      _
    %42 = vsyncpa [#allocation3], 1
    %43 = vsyncpa [#allocation4], 1

</llo_original>
